<compile_context>
chip_gen: v7x
topology: tpu7x:2x2x1
jax: 0.10.0
libtpu: 0.0.40
codegen_flags: <defaults>
</compile_context>

<pallas_src>
import functools
import math

import jax
import jax.numpy as jnp
from jax import lax
from jax.experimental import pallas as pl
from jax.experimental.pallas import tpu as pltpu

EPS = 1e-5
NEG_SLOPE = 0.01


# ------------------------- fused Pallas kernel -------------------------------

def _fused_conv_bn_lrelu_kernel(a_ref, w_ref, g_ref, b_ref, o_ref,
                                *, m_valid, m_pad, tm):
    """Per grid step: matmul one column tile of Y^T = W^T @ A^T into the
    VMEM-resident output; on the last step compute BN statistics over all
    columns and apply normalize + LeakyReLU in place."""
    i = pl.program_id(0)

    # conv hot path: (Cout, K) @ (K, tm) on the MXU, f32 accumulate.
    y = jnp.dot(w_ref[...], a_ref[...], preferred_element_type=jnp.float32)
    col0 = pl.multiple_of(i * tm, 128)
    o_ref[:, pl.ds(col0, tm)] = y

    @pl.when(i == pl.num_programs(0) - 1)
    def _():
        yf = o_ref[...]                                    # (Cout, m_pad) f32
        inv_m = 1.0 / float(m_valid)
        if m_pad == m_valid:
            mean = jnp.sum(yf, axis=1, keepdims=True) * inv_m
            d = yf - mean
            var = jnp.sum(d * d, axis=1, keepdims=True) * inv_m
        else:
            col = lax.broadcasted_iota(jnp.int32, yf.shape, 1)
            mask = col < m_valid
            mean = jnp.sum(jnp.where(mask, yf, 0.0), axis=1,
                           keepdims=True) * inv_m
            d = jnp.where(mask, yf - mean, 0.0)
            var = jnp.sum(d * d, axis=1, keepdims=True) * inv_m
        scale = g_ref[...] * lax.rsqrt(var + EPS)          # (Cout, 1)
        shift = b_ref[...] - mean * scale
        z = yf * scale + shift
        o_ref[...] = jnp.where(z >= 0, z, NEG_SLOPE * z)


def fused_conv_bn_lrelu(a_t, w_t, gamma, beta, *, m_valid):
    """a_t: [K, M_pad] im2col patches (transposed); w_t: [Cout, K];
    gamma/beta: [Cout, 1].  Returns Y^T : [Cout, M_pad] (normalized, LReLU)."""
    K, m_pad = a_t.shape
    Cout = w_t.shape[0]
    tm = next(t for t in (1024, 512, 256, 128) if m_pad % t == 0)
    nsteps = m_pad // tm

    kernel = functools.partial(_fused_conv_bn_lrelu_kernel,
                               m_valid=m_valid, m_pad=m_pad, tm=tm)
    flops = 2 * Cout * K * m_pad + 10 * Cout * m_pad
    bytes_accessed = 4 * (K * m_pad + Cout * K + 2 * Cout + Cout * m_pad)

    return pl.pallas_call(
        kernel,
        out_shape=jax.ShapeDtypeStruct((Cout, m_pad), jnp.float32),
        grid_spec=pltpu.PrefetchScalarGridSpec(
            num_scalar_prefetch=0,
            grid=(nsteps,),
            in_specs=[
                pl.BlockSpec((K, tm), lambda i: (0, i)),      # A^T column tile
                pl.BlockSpec((Cout, K), lambda i: (0, 0)),    # W^T (resident)
                pl.BlockSpec((Cout, 1), lambda i: (0, 0)),    # gamma
                pl.BlockSpec((Cout, 1), lambda i: (0, 0)),    # beta
            ],
            out_specs=pl.BlockSpec((Cout, m_pad), lambda i: (0, 0)),
        ),
        compiler_params=pltpu.CompilerParams(
            dimension_semantics=("arbitrary",)),
        cost_estimate=pl.CostEstimate(flops=flops,
                                      transcendentals=Cout,
                                      bytes_accessed=bytes_accessed),
    )(a_t, w_t, gamma, beta)


# ------------------------------- glue (JAX) ----------------------------------

def _round_up(x, m):
    return ((x + m - 1) // m) * m


def im2col_t(x_nchw, k, stride, pad):
    """x: [N,C,H,W] -> A^T [k*k*C, N*Ho*Wo] with row order (dh, dw, c) and
    column order (n, ho, wo)."""
    N, C, H, W = x_nchw.shape
    xp = jnp.pad(x_nchw, ((0, 0), (0, 0), (pad, pad), (pad, pad)))
    Ho = (H + 2 * pad - k) // stride + 1
    Wo = (W + 2 * pad - k) // stride + 1
    taps = []
    for dh in range(k):
        for dw in range(k):
            taps.append(xp[:, :, dh:dh + stride * Ho:stride,
                           dw:dw + stride * Wo:stride])      # (N,C,Ho,Wo)
    a = jnp.stack(taps, axis=0)                              # (k*k,N,C,Ho,Wo)
    a = jnp.transpose(a, (0, 2, 1, 3, 4))                    # (k*k,C,N,Ho,Wo)
    a = a.reshape(k * k * C, N * Ho * Wo)
    return a, Ho, Wo


def conv_block(x_nchw, w, gamma, beta, stride, pad):
    """Conv2d(bias=False) -> BatchNorm2d(train stats) -> LeakyReLU, NCHW."""
    Cout, Cin, k, _ = w.shape
    N = x_nchw.shape[0]

    a_t, Ho, Wo = im2col_t(x_nchw, k, stride, pad)           # (K, M)
    K, M = a_t.shape
    m_pad = _round_up(M, 128)
    if m_pad != M:
        a_t = jnp.pad(a_t, ((0, 0), (0, m_pad - M)))

    w_t = jnp.transpose(w, (0, 2, 3, 1)).reshape(Cout, K)    # (Cout, K)

    y_t = fused_conv_bn_lrelu(a_t, w_t,
                              gamma.reshape(Cout, 1),
                              beta.reshape(Cout, 1),
                              m_valid=M)                     # (Cout, m_pad)
    y_t = y_t[:, :M]
    return jnp.transpose(y_t.reshape(Cout, N, Ho, Wo), (1, 0, 2, 3))


def encoder_forward(params, x_nchw, kernel_size):
    """Mirrors Encoder.forward: returns (x, p), both NCHW."""
    pad_same = (kernel_size - 1) // 2
    pad_pool = math.ceil((1 - 2 + (kernel_size - 1)) / 2)

    h = conv_block(x_nchw, params["w1"], params["g1"], params["b1"], 1, pad_same)
    h = conv_block(h, params["w2"], params["g2"], params["b2"], 1, pad_same)
    p = conv_block(h, params["w3"], params["g3"], params["b3"], 2, pad_pool)
    return h, p


# -------------------------------- reference ----------------------------------

def _ref_block(x, w, stride, pad):
    y = lax.conv_general_dilated(
        x, w, window_strides=(stride, stride),
        padding=[(pad, pad), (pad, pad)],
        dimension_numbers=("NCHW", "OIHW", "NCHW"),
        precision=lax.Precision.HIGHEST)
    mean = y.mean(axis=(0, 2, 3), keepdims=True)
    var = y.var(axis=(0, 2, 3), keepdims=True)               # biased
    y = (y - mean) / jnp.sqrt(var + EPS)
    return jnp.where(y >= 0, y, NEG_SLOPE * y)


def encoder_reference(params, x, kernel_size):
    pad_same = (kernel_size - 1) // 2
    pad_pool = math.ceil((1 - 2 + (kernel_size - 1)) / 2)
    h = _ref_block(x, params["w1"], 1, pad_same)
    h = _ref_block(h, params["w2"], 1, pad_same)
    p = _ref_block(h, params["w3"], 2, pad_pool)
    return h, p


# ---------------------------------- main --------------------------------------

if __name__ == "__main__":
    N, Cin, Cout, H, W, K = 2, 4, 8, 16, 16, 3

    key = jax.random.PRNGKey(0)
    kx, k1, k2, k3 = jax.random.split(key, 4)

    x = jax.random.normal(kx, (N, Cin, H, W), dtype=jnp.float32)

    params = {
        "w1": 0.1 * jax.random.normal(k1, (Cout, Cin, K, K), dtype=jnp.float32),
        "g1": jnp.ones((Cout,), jnp.float32), "b1": jnp.zeros((Cout,), jnp.float32),
        "w2": 0.1 * jax.random.normal(k2, (Cout, Cout, K, K), dtype=jnp.float32),
        "g2": jnp.ones((Cout,), jnp.float32), "b2": jnp.zeros((Cout,), jnp.float32),
        "w3": 0.1 * jax.random.normal(k3, (Cout, Cout, K, K), dtype=jnp.float32),
        "g3": jnp.ones((Cout,), jnp.float32), "b3": jnp.zeros((Cout,), jnp.float32),
    }

    fwd = jax.jit(lambda p, a: encoder_forward(p, a, K))
    x_out, p_out = fwd(params, x)
    jax.block_until_ready((x_out, p_out))

    assert x_out.shape == (N, Cout, H, W), x_out.shape
    assert p_out.shape == (N, Cout, H // 2, W // 2), p_out.shape

    x_ref, p_ref = encoder_reference(params, x, K)
    err_x = float(jnp.max(jnp.abs(x_out - x_ref)))
    err_p = float(jnp.max(jnp.abs(p_out - p_ref)))
    assert err_x < 0.1 and err_p < 0.1, (err_x, err_p)

    print("KERNEL_OK")
</pallas_src>

<mosaic_0001>
module attributes {stable_mosaic.version = 11 : i64} {
  func.func @_fused_conv_bn_lrelu_kernel(%arg0: i32, %arg1: memref<36x512xf32, #tpu.memory_space<vmem>>, %arg2: memref<8x36xf32, #tpu.memory_space<vmem>>, %arg3: memref<8x1xf32, #tpu.memory_space<vmem>>, %arg4: memref<8x1xf32, #tpu.memory_space<vmem>>, %arg5: memref<8x512xf32, #tpu.memory_space<vmem>>) attributes {dimension_semantics = [#tpu.dimension_semantics<arbitrary>], iteration_bounds = array<i64: 1>, scalar_prefetch = 0 : i64, scratch_operands = 0 : i64, tpu.core_type = #tpu.core_type<tc>, window_params = [{transform_indices = @transform_0, window_bounds = array<i64: 36, 512>}, {pipeline_mode = #tpu.pipeline_mode<synchronous>, transform_indices = @transform_1, window_bounds = array<i64: 8, 36>}, {pipeline_mode = #tpu.pipeline_mode<synchronous>, transform_indices = @transform_2, window_bounds = array<i64: 8, 1>}, {pipeline_mode = #tpu.pipeline_mode<synchronous>, transform_indices = @transform_3, window_bounds = array<i64: 8, 1>}, {pipeline_mode = #tpu.pipeline_mode<synchronous>, transform_indices = @transform_4, window_bounds = array<i64: 8, 512>}]} {
    %c0 = arith.constant 0 : index
    %c0_0 = arith.constant 0 : index
    %0 = vector.load %arg2[%c0, %c0_0] : memref<8x36xf32, #tpu.memory_space<vmem>>, vector<8x36xf32>
    %c0_1 = arith.constant 0 : index
    %c0_2 = arith.constant 0 : index
    %1 = vector.load %arg1[%c0_1, %c0_2] : memref<36x512xf32, #tpu.memory_space<vmem>>, vector<36x512xf32>
    %cst = arith.constant dense<0.000000e+00> : vector<8x512xf32>
    %2 = tpu.matmul %0, %1, %cst {dimension_numbers = #tpu.dot_dimension_numbers<[1], [0], [0], [1], [0, 0, 1, 1], [], []>} : vector<8x36xf32>, vector<36x512xf32>, vector<8x512xf32> -> vector<8x512xf32>
    %c512_i32 = arith.constant 512 : i32
    %3 = arith.muli %arg0, %c512_i32 : i32
    %4 = tpu.assume_multiple %3, 128 : i32
    %c0_3 = arith.constant 0 : index
    %5 = arith.index_cast %4 : i32 to index
    %6 = vector.load %arg5[%c0_3, %5] : memref<8x512xf32, #tpu.memory_space<vmem>>, vector<8x512xf32>
    tpu.vector_store %arg5[%c0_3, %5], %2 {strides = array<i32>} : memref<8x512xf32, #tpu.memory_space<vmem>>, vector<8x512xf32>,
    %c0_i32 = arith.constant 0 : i32
    %7 = arith.cmpi eq, %arg0, %c0_i32 : i32
    %8 = arith.extui %7 : i1 to i32
    %c0_i32_4 = arith.constant 0 : i32
    %9 = arith.cmpi ne, %8, %c0_i32_4 : i32
    scf.if %9 {
      %c0_5 = arith.constant 0 : index
      %c0_6 = arith.constant 0 : index
      %10 = vector.load %arg5[%c0_5, %c0_6] : memref<8x512xf32, #tpu.memory_space<vmem>>, vector<8x512xf32>
      %cst_7 = arith.constant dense<0.000000e+00> : vector<8xf32>
      %11 = vector.multi_reduction <add>, %10, %cst_7 [1] : vector<8x512xf32> to vector<8xf32>
      %12 = vector.shape_cast %11 : vector<8xf32> to vector<8x1xf32>
      %cst_8 = arith.constant 0.001953125 : f32
      %13 = vector.broadcast %cst_8 : f32 to vector<8x1xf32>
      %14 = arith.mulf %12, %13 : vector<8x1xf32>
      %15 = vector.broadcast %14 : vector<8x1xf32> to vector<8x512xf32>
      %16 = arith.subf %10, %15 : vector<8x512xf32>
      %17 = arith.mulf %16, %16 : vector<8x512xf32>
      %cst_9 = arith.constant dense<0.000000e+00> : vector<8xf32>
      %18 = vector.multi_reduction <add>, %17, %cst_9 [1] : vector<8x512xf32> to vector<8xf32>
      %19 = vector.shape_cast %18 : vector<8xf32> to vector<8x1xf32>
      %cst_10 = arith.constant 0.001953125 : f32
      %20 = vector.broadcast %cst_10 : f32 to vector<8x1xf32>
      %21 = arith.mulf %19, %20 : vector<8x1xf32>
      %c0_11 = arith.constant 0 : index
      %c0_12 = arith.constant 0 : index
      %22 = vector.load %arg3[%c0_11, %c0_12] : memref<8x1xf32, #tpu.memory_space<vmem>>, vector<8x1xf32>
      %cst_13 = arith.constant 9.99999974E-6 : f32
      %23 = vector.broadcast %cst_13 : f32 to vector<8x1xf32>
      %24 = arith.addf %21, %23 : vector<8x1xf32>
      %25 = math.rsqrt %24 : vector<8x1xf32>
      %26 = arith.mulf %22, %25 : vector<8x1xf32>
      %c0_14 = arith.constant 0 : index
      %c0_15 = arith.constant 0 : index
      %27 = vector.load %arg4[%c0_14, %c0_15] : memref<8x1xf32, #tpu.memory_space<vmem>>, vector<8x1xf32>
      %28 = arith.mulf %14, %26 : vector<8x1xf32>
      %29 = arith.subf %27, %28 : vector<8x1xf32>
      %30 = vector.broadcast %26 : vector<8x1xf32> to vector<8x512xf32>
      %31 = arith.mulf %10, %30 : vector<8x512xf32>
      %32 = vector.broadcast %29 : vector<8x1xf32> to vector<8x512xf32>
      %33 = arith.addf %31, %32 : vector<8x512xf32>
      %cst_16 = arith.constant 0.000000e+00 : f32
      %34 = vector.broadcast %cst_16 : f32 to vector<8x512xf32>
      %35 = arith.cmpf oge, %33, %34 : vector<8x512xf32>
      %cst_17 = arith.constant 0.00999999977 : f32
      %36 = vector.broadcast %cst_17 : f32 to vector<8x512xf32>
      %37 = arith.mulf %36, %33 : vector<8x512xf32>
      %38 = arith.select %35, %33, %37 : vector<8x512xi1>, vector<8x512xf32>
      %c0_18 = arith.constant 0 : index
      %c0_19 = arith.constant 0 : index
      %39 = vector.load %arg5[%c0_18, %c0_19] : memref<8x512xf32, #tpu.memory_space<vmem>>, vector<8x512xf32>
      tpu.vector_store %arg5[%c0_18, %c0_19], %38 {strides = array<i32>} : memref<8x512xf32, #tpu.memory_space<vmem>>, vector<8x512xf32>,
    } else {
    }
    return
  }
  func.func @transform_0(%arg0: i32) -> (i32, i32) {
    %c0_i32 = arith.constant 0 : i32
    %c0_i32_0 = arith.constant 0 : i32
    return %c0_i32, %arg0 : i32, i32
  }
  func.func @transform_1(%arg0: i32) -> (i32, i32) {
    %c0_i32 = arith.constant 0 : i32
    %c0_i32_0 = arith.constant 0 : i32
    %c0_i32_1 = arith.constant 0 : i32
    return %c0_i32, %c0_i32_0 : i32, i32
  }
  func.func @transform_2(%arg0: i32) -> (i32, i32) {
    %c0_i32 = arith.constant 0 : i32
    %c0_i32_0 = arith.constant 0 : i32
    %c0_i32_1 = arith.constant 0 : i32
    return %c0_i32, %c0_i32_0 : i32, i32
  }
  func.func @transform_3(%arg0: i32) -> (i32, i32) {
    %c0_i32 = arith.constant 0 : i32
    %c0_i32_0 = arith.constant 0 : i32
    %c0_i32_1 = arith.constant 0 : i32
    return %c0_i32, %c0_i32_0 : i32, i32
  }
  func.func @transform_4(%arg0: i32) -> (i32, i32) {
    %c0_i32 = arith.constant 0 : i32
    %c0_i32_0 = arith.constant 0 : i32
    %c0_i32_1 = arith.constant 0 : i32
    return %c0_i32, %c0_i32_0 : i32, i32
  }
}

module attributes {stable_mosaic.version = 11 : i64} {
  func.func @_fused_conv_bn_lrelu_kernel(%arg0: i32, %arg1: memref<72x512xf32, #tpu.memory_space<vmem>>, %arg2: memref<8x72xf32, #tpu.memory_space<vmem>>, %arg3: memref<8x1xf32, #tpu.memory_space<vmem>>, %arg4: memref<8x1xf32, #tpu.memory_space<vmem>>, %arg5: memref<8x512xf32, #tpu.memory_space<vmem>>) attributes {dimension_semantics = [#tpu.dimension_semantics<arbitrary>], iteration_bounds = array<i64: 1>, scalar_prefetch = 0 : i64, scratch_operands = 0 : i64, tpu.core_type = #tpu.core_type<tc>, window_params = [{transform_indices = @transform_0, window_bounds = array<i64: 72, 512>}, {pipeline_mode = #tpu.pipeline_mode<synchronous>, transform_indices = @transform_1, window_bounds = array<i64: 8, 72>}, {pipeline_mode = #tpu.pipeline_mode<synchronous>, transform_indices = @transform_2, window_bounds = array<i64: 8, 1>}, {pipeline_mode = #tpu.pipeline_mode<synchronous>, transform_indices = @transform_3, window_bounds = array<i64: 8, 1>}, {pipeline_mode = #tpu.pipeline_mode<synchronous>, transform_indices = @transform_4, window_bounds = array<i64: 8, 512>}]} {
    %c0 = arith.constant 0 : index
    %c0_0 = arith.constant 0 : index
    %0 = vector.load %arg2[%c0, %c0_0] : memref<8x72xf32, #tpu.memory_space<vmem>>, vector<8x72xf32>
    %c0_1 = arith.constant 0 : index
    %c0_2 = arith.constant 0 : index
    %1 = vector.load %arg1[%c0_1, %c0_2] : memref<72x512xf32, #tpu.memory_space<vmem>>, vector<72x512xf32>
    %cst = arith.constant dense<0.000000e+00> : vector<8x512xf32>
    %2 = tpu.matmul %0, %1, %cst {dimension_numbers = #tpu.dot_dimension_numbers<[1], [0], [0], [1], [0, 0, 1, 1], [], []>} : vector<8x72xf32>, vector<72x512xf32>, vector<8x512xf32> -> vector<8x512xf32>
    %c512_i32 = arith.constant 512 : i32
    %3 = arith.muli %arg0, %c512_i32 : i32
    %4 = tpu.assume_multiple %3, 128 : i32
    %c0_3 = arith.constant 0 : index
    %5 = arith.index_cast %4 : i32 to index
    %6 = vector.load %arg5[%c0_3, %5] : memref<8x512xf32, #tpu.memory_space<vmem>>, vector<8x512xf32>
    tpu.vector_store %arg5[%c0_3, %5], %2 {strides = array<i32>} : memref<8x512xf32, #tpu.memory_space<vmem>>, vector<8x512xf32>,
    %c0_i32 = arith.constant 0 : i32
    %7 = arith.cmpi eq, %arg0, %c0_i32 : i32
    %8 = arith.extui %7 : i1 to i32
    %c0_i32_4 = arith.constant 0 : i32
    %9 = arith.cmpi ne, %8, %c0_i32_4 : i32
    scf.if %9 {
      %c0_5 = arith.constant 0 : index
      %c0_6 = arith.constant 0 : index
      %10 = vector.load %arg5[%c0_5, %c0_6] : memref<8x512xf32, #tpu.memory_space<vmem>>, vector<8x512xf32>
      %cst_7 = arith.constant dense<0.000000e+00> : vector<8xf32>
      %11 = vector.multi_reduction <add>, %10, %cst_7 [1] : vector<8x512xf32> to vector<8xf32>
      %12 = vector.shape_cast %11 : vector<8xf32> to vector<8x1xf32>
      %cst_8 = arith.constant 0.001953125 : f32
      %13 = vector.broadcast %cst_8 : f32 to vector<8x1xf32>
      %14 = arith.mulf %12, %13 : vector<8x1xf32>
      %15 = vector.broadcast %14 : vector<8x1xf32> to vector<8x512xf32>
      %16 = arith.subf %10, %15 : vector<8x512xf32>
      %17 = arith.mulf %16, %16 : vector<8x512xf32>
      %cst_9 = arith.constant dense<0.000000e+00> : vector<8xf32>
      %18 = vector.multi_reduction <add>, %17, %cst_9 [1] : vector<8x512xf32> to vector<8xf32>
      %19 = vector.shape_cast %18 : vector<8xf32> to vector<8x1xf32>
      %cst_10 = arith.constant 0.001953125 : f32
      %20 = vector.broadcast %cst_10 : f32 to vector<8x1xf32>
      %21 = arith.mulf %19, %20 : vector<8x1xf32>
      %c0_11 = arith.constant 0 : index
      %c0_12 = arith.constant 0 : index
      %22 = vector.load %arg3[%c0_11, %c0_12] : memref<8x1xf32, #tpu.memory_space<vmem>>, vector<8x1xf32>
      %cst_13 = arith.constant 9.99999974E-6 : f32
      %23 = vector.broadcast %cst_13 : f32 to vector<8x1xf32>
      %24 = arith.addf %21, %23 : vector<8x1xf32>
      %25 = math.rsqrt %24 : vector<8x1xf32>
      %26 = arith.mulf %22, %25 : vector<8x1xf32>
      %c0_14 = arith.constant 0 : index
      %c0_15 = arith.constant 0 : index
      %27 = vector.load %arg4[%c0_14, %c0_15] : memref<8x1xf32, #tpu.memory_space<vmem>>, vector<8x1xf32>
      %28 = arith.mulf %14, %26 : vector<8x1xf32>
      %29 = arith.subf %27, %28 : vector<8x1xf32>
      %30 = vector.broadcast %26 : vector<8x1xf32> to vector<8x512xf32>
      %31 = arith.mulf %10, %30 : vector<8x512xf32>
      %32 = vector.broadcast %29 : vector<8x1xf32> to vector<8x512xf32>
      %33 = arith.addf %31, %32 : vector<8x512xf32>
      %cst_16 = arith.constant 0.000000e+00 : f32
      %34 = vector.broadcast %cst_16 : f32 to vector<8x512xf32>
      %35 = arith.cmpf oge, %33, %34 : vector<8x512xf32>
      %cst_17 = arith.constant 0.00999999977 : f32
      %36 = vector.broadcast %cst_17 : f32 to vector<8x512xf32>
      %37 = arith.mulf %36, %33 : vector<8x512xf32>
      %38 = arith.select %35, %33, %37 : vector<8x512xi1>, vector<8x512xf32>
      %c0_18 = arith.constant 0 : index
      %c0_19 = arith.constant 0 : index
      %39 = vector.load %arg5[%c0_18, %c0_19] : memref<8x512xf32, #tpu.memory_space<vmem>>, vector<8x512xf32>
      tpu.vector_store %arg5[%c0_18, %c0_19], %38 {strides = array<i32>} : memref<8x512xf32, #tpu.memory_space<vmem>>, vector<8x512xf32>,
    } else {
    }
    return
  }
  func.func @transform_0(%arg0: i32) -> (i32, i32) {
    %c0_i32 = arith.constant 0 : i32
    %c0_i32_0 = arith.constant 0 : i32
    return %c0_i32, %arg0 : i32, i32
  }
  func.func @transform_1(%arg0: i32) -> (i32, i32) {
    %c0_i32 = arith.constant 0 : i32
    %c0_i32_0 = arith.constant 0 : i32
    %c0_i32_1 = arith.constant 0 : i32
    return %c0_i32, %c0_i32_0 : i32, i32
  }
  func.func @transform_2(%arg0: i32) -> (i32, i32) {
    %c0_i32 = arith.constant 0 : i32
    %c0_i32_0 = arith.constant 0 : i32
    %c0_i32_1 = arith.constant 0 : i32
    return %c0_i32, %c0_i32_0 : i32, i32
  }
  func.func @transform_3(%arg0: i32) -> (i32, i32) {
    %c0_i32 = arith.constant 0 : i32
    %c0_i32_0 = arith.constant 0 : i32
    %c0_i32_1 = arith.constant 0 : i32
    return %c0_i32, %c0_i32_0 : i32, i32
  }
  func.func @transform_4(%arg0: i32) -> (i32, i32) {
    %c0_i32 = arith.constant 0 : i32
    %c0_i32_0 = arith.constant 0 : i32
    %c0_i32_1 = arith.constant 0 : i32
    return %c0_i32, %c0_i32_0 : i32, i32
  }
}

module attributes {stable_mosaic.version = 11 : i64} {
  func.func @_fused_conv_bn_lrelu_kernel(%arg0: i32, %arg1: memref<72x128xf32, #tpu.memory_space<vmem>>, %arg2: memref<8x72xf32, #tpu.memory_space<vmem>>, %arg3: memref<8x1xf32, #tpu.memory_space<vmem>>, %arg4: memref<8x1xf32, #tpu.memory_space<vmem>>, %arg5: memref<8x128xf32, #tpu.memory_space<vmem>>) attributes {dimension_semantics = [#tpu.dimension_semantics<arbitrary>], iteration_bounds = array<i64: 1>, scalar_prefetch = 0 : i64, scratch_operands = 0 : i64, tpu.core_type = #tpu.core_type<tc>, window_params = [{transform_indices = @transform_0, window_bounds = array<i64: 72, 128>}, {pipeline_mode = #tpu.pipeline_mode<synchronous>, transform_indices = @transform_1, window_bounds = array<i64: 8, 72>}, {pipeline_mode = #tpu.pipeline_mode<synchronous>, transform_indices = @transform_2, window_bounds = array<i64: 8, 1>}, {pipeline_mode = #tpu.pipeline_mode<synchronous>, transform_indices = @transform_3, window_bounds = array<i64: 8, 1>}, {pipeline_mode = #tpu.pipeline_mode<synchronous>, transform_indices = @transform_4, window_bounds = array<i64: 8, 128>}]} {
    %c0 = arith.constant 0 : index
    %c0_0 = arith.constant 0 : index
    %0 = vector.load %arg2[%c0, %c0_0] : memref<8x72xf32, #tpu.memory_space<vmem>>, vector<8x72xf32>
    %c0_1 = arith.constant 0 : index
    %c0_2 = arith.constant 0 : index
    %1 = vector.load %arg1[%c0_1, %c0_2] : memref<72x128xf32, #tpu.memory_space<vmem>>, vector<72x128xf32>
    %cst = arith.constant dense<0.000000e+00> : vector<8x128xf32>
    %2 = tpu.matmul %0, %1, %cst {dimension_numbers = #tpu.dot_dimension_numbers<[1], [0], [0], [1], [0, 0, 1, 1], [], []>} : vector<8x72xf32>, vector<72x128xf32>, vector<8x128xf32> -> vector<8x128xf32>
    %c128_i32 = arith.constant 128 : i32
    %3 = arith.muli %arg0, %c128_i32 : i32
    %4 = tpu.assume_multiple %3, 128 : i32
    %c0_3 = arith.constant 0 : index
    %5 = arith.index_cast %4 : i32 to index
    %6 = vector.load %arg5[%c0_3, %5] : memref<8x128xf32, #tpu.memory_space<vmem>>, vector<8x128xf32>
    tpu.vector_store %arg5[%c0_3, %5], %2 {strides = array<i32>} : memref<8x128xf32, #tpu.memory_space<vmem>>, vector<8x128xf32>,
    %c0_i32 = arith.constant 0 : i32
    %7 = arith.cmpi eq, %arg0, %c0_i32 : i32
    %8 = arith.extui %7 : i1 to i32
    %c0_i32_4 = arith.constant 0 : i32
    %9 = arith.cmpi ne, %8, %c0_i32_4 : i32
    scf.if %9 {
      %c0_5 = arith.constant 0 : index
      %c0_6 = arith.constant 0 : index
      %10 = vector.load %arg5[%c0_5, %c0_6] : memref<8x128xf32, #tpu.memory_space<vmem>>, vector<8x128xf32>
      %cst_7 = arith.constant dense<0.000000e+00> : vector<8xf32>
      %11 = vector.multi_reduction <add>, %10, %cst_7 [1] : vector<8x128xf32> to vector<8xf32>
      %12 = vector.shape_cast %11 : vector<8xf32> to vector<8x1xf32>
      %cst_8 = arith.constant 7.812500e-03 : f32
      %13 = vector.broadcast %cst_8 : f32 to vector<8x1xf32>
      %14 = arith.mulf %12, %13 : vector<8x1xf32>
      %15 = vector.broadcast %14 : vector<8x1xf32> to vector<8x128xf32>
      %16 = arith.subf %10, %15 : vector<8x128xf32>
      %17 = arith.mulf %16, %16 : vector<8x128xf32>
      %cst_9 = arith.constant dense<0.000000e+00> : vector<8xf32>
      %18 = vector.multi_reduction <add>, %17, %cst_9 [1] : vector<8x128xf32> to vector<8xf32>
      %19 = vector.shape_cast %18 : vector<8xf32> to vector<8x1xf32>
      %cst_10 = arith.constant 7.812500e-03 : f32
      %20 = vector.broadcast %cst_10 : f32 to vector<8x1xf32>
      %21 = arith.mulf %19, %20 : vector<8x1xf32>
      %c0_11 = arith.constant 0 : index
      %c0_12 = arith.constant 0 : index
      %22 = vector.load %arg3[%c0_11, %c0_12] : memref<8x1xf32, #tpu.memory_space<vmem>>, vector<8x1xf32>
      %cst_13 = arith.constant 9.99999974E-6 : f32
      %23 = vector.broadcast %cst_13 : f32 to vector<8x1xf32>
      %24 = arith.addf %21, %23 : vector<8x1xf32>
      %25 = math.rsqrt %24 : vector<8x1xf32>
      %26 = arith.mulf %22, %25 : vector<8x1xf32>
      %c0_14 = arith.constant 0 : index
      %c0_15 = arith.constant 0 : index
      %27 = vector.load %arg4[%c0_14, %c0_15] : memref<8x1xf32, #tpu.memory_space<vmem>>, vector<8x1xf32>
      %28 = arith.mulf %14, %26 : vector<8x1xf32>
      %29 = arith.subf %27, %28 : vector<8x1xf32>
      %30 = vector.broadcast %26 : vector<8x1xf32> to vector<8x128xf32>
      %31 = arith.mulf %10, %30 : vector<8x128xf32>
      %32 = vector.broadcast %29 : vector<8x1xf32> to vector<8x128xf32>
      %33 = arith.addf %31, %32 : vector<8x128xf32>
      %cst_16 = arith.constant 0.000000e+00 : f32
      %34 = vector.broadcast %cst_16 : f32 to vector<8x128xf32>
      %35 = arith.cmpf oge, %33, %34 : vector<8x128xf32>
      %cst_17 = arith.constant 0.00999999977 : f32
      %36 = vector.broadcast %cst_17 : f32 to vector<8x128xf32>
      %37 = arith.mulf %36, %33 : vector<8x128xf32>
      %38 = arith.select %35, %33, %37 : vector<8x128xi1>, vector<8x128xf32>
      %c0_18 = arith.constant 0 : index
      %c0_19 = arith.constant 0 : index
      %39 = vector.load %arg5[%c0_18, %c0_19] : memref<8x128xf32, #tpu.memory_space<vmem>>, vector<8x128xf32>
      tpu.vector_store %arg5[%c0_18, %c0_19], %38 {strides = array<i32>} : memref<8x128xf32, #tpu.memory_space<vmem>>, vector<8x128xf32>,
    } else {
    }
    return
  }
  func.func @transform_0(%arg0: i32) -> (i32, i32) {
    %c0_i32 = arith.constant 0 : i32
    %c0_i32_0 = arith.constant 0 : i32
    return %c0_i32, %arg0 : i32, i32
  }
  func.func @transform_1(%arg0: i32) -> (i32, i32) {
    %c0_i32 = arith.constant 0 : i32
    %c0_i32_0 = arith.constant 0 : i32
    %c0_i32_1 = arith.constant 0 : i32
    return %c0_i32, %c0_i32_0 : i32, i32
  }
  func.func @transform_2(%arg0: i32) -> (i32, i32) {
    %c0_i32 = arith.constant 0 : i32
    %c0_i32_0 = arith.constant 0 : i32
    %c0_i32_1 = arith.constant 0 : i32
    return %c0_i32, %c0_i32_0 : i32, i32
  }
  func.func @transform_3(%arg0: i32) -> (i32, i32) {
    %c0_i32 = arith.constant 0 : i32
    %c0_i32_0 = arith.constant 0 : i32
    %c0_i32_1 = arith.constant 0 : i32
    return %c0_i32, %c0_i32_0 : i32, i32
  }
  func.func @transform_4(%arg0: i32) -> (i32, i32) {
    %c0_i32 = arith.constant 0 : i32
    %c0_i32_0 = arith.constant 0 : i32
    %c0_i32_1 = arith.constant 0 : i32
    return %c0_i32, %c0_i32_0 : i32, i32
  }
}

</mosaic_0001>

<llo_original>
// kernel: _lambda_.3
$region0: #{_lambda_.3}
  #allocation0 [shape = 'u32[]', space=smem, size = 0x4, offset = 0x4, fixed_abs, tag = 'smem constant byte address 0x4 - core index']
  #allocation1 [shape = 'u32[144,128]{1,0:T(1,128)}', space=vmem, size = 0x12000, scoped, tag = 'internal scratch']
  %s0 = inlined_call_operand.vmem [shape: f32[36,512], index: 0, kind: input, shape index: {}]
  %s1 = inlined_call_operand.vmem [shape: f32[8,36], index: 1, kind: input, shape index: {}]
  %s2 = inlined_call_operand.vmem [shape: f32[8,1], index: 2, kind: input, shape index: {}]
  %s3 = inlined_call_operand.vmem [shape: f32[8,1], index: 3, kind: input, shape index: {}]
  %s4 = inlined_call_operand.vmem [shape: f32[8,512], index: 4, kind: output, shape index: {}]
  %s5 = sld [smem:[#allocation0]]
  $region30: #{_lambda_.3} parent=0
    _
  %s7 = ssub.s32 1, %s5
  %s8 = scalar_select 0, %s7, %s5
  // Predicated region
  $region2: #{_lambda_.3} parent=0 // pred_check
    _
  $region3: #{_lambda_.3} parent=0 // pred_check_branch
    %10 = sbr.rel (0) target = $region5
  $region4: #{_lambda_.3} parent=0 // pred_region
    _
  $region5: #{_lambda_.3} parent=0 // pred_fallthru
    _
  // Predicated region
  $region6: #{_lambda_.3} parent=0 // pred_check
    _
  $region7: #{_lambda_.3} parent=0 // pred_check_branch
    %12 = sbr.rel (0) target = $region9
  $region8: #{_lambda_.3} parent=0 // pred_region
    _
  $region9: #{_lambda_.3} parent=0 // pred_fallthru
    _
  // Predicated region
  $region10: #{_lambda_.3} parent=0 // pred_check
    _
  $region11: #{_lambda_.3} parent=0 // pred_check_branch
    %14 = sbr.rel (0) target = $region13
  $region12: #{_lambda_.3} parent=0 // pred_region
    _
  $region13: #{_lambda_.3} parent=0 // pred_fallthru
    _
  // Predicated region
  $region14: #{_lambda_.3} parent=0 // pred_check
    _
  $region15: #{_lambda_.3} parent=0 // pred_check_branch
    %16 = sbr.rel (0) target = $region17
  $region16: #{_lambda_.3} parent=0 // pred_region
    _
  $region17: #{_lambda_.3} parent=0 // pred_fallthru
    _
  %v17 = vld [vmem:[%s1] sm:$0xff]
  %v18 = vld [vmem:[%s0] sm:$0xff]
  %v19 = vld [vmem:[%s0 + $0x8] sm:$0xff]
  %v20 = vld [vmem:[%s0 + $0x10] sm:$0xff]
  %v21 = vld [vmem:[%s0 + $0x18] sm:$0xff]
  %v22 = vld [vmem:[%s0 + $0x20] sm:$0xff]
  %v23 = vld [vmem:[%s0 + $0x28] sm:$0xff]
  %v24 = vld [vmem:[%s0 + $0x30] sm:$0xff]
  %v25 = vld [vmem:[%s0 + $0x38] sm:$0xff]
  %v26 = vld [vmem:[%s0 + $0x40] sm:$0xff]
  %v27 = vld [vmem:[%s0 + $0x48] sm:$0xff]
  %v28 = vld [vmem:[%s0 + $0x50] sm:$0xff]
  %v29 = vld [vmem:[%s0 + $0x58] sm:$0xff]
  %v30 = vld [vmem:[%s0 + $0x60] sm:$0xff]
  %v31 = vld [vmem:[%s0 + $0x68] sm:$0xff]
  %v32 = vld [vmem:[%s0 + $0x70] sm:$0xff]
  %v33 = vld [vmem:[%s0 + $0x78] sm:$0xff]
  %v34 = vld [vmem:[%s0 + $0x80] sm:$0xf]
  %v35 = vld [vmem:[%s0 + $0x88] sm:$0xf]
  %v36 = vld [vmem:[%s0 + $0x90] sm:$0xf]
  %v37 = vld [vmem:[%s0 + $0x98] sm:$0xf]
  %vm38 = vcmask 293888
  %v40 = vsel %vm38, %v17, 0
  %vm42 = vcmask 1043456
  %v44 = vsel %vm42, %v34, 0
  %v47 = vsel %vm42, %v35, 0
  %v50 = vsel %vm42, %v36, 0
  %v53 = vsel %vm42, %v37, 0
  %55 = vmatprep.subr.mxu0 %v19
  %56 = vmatpush1.msra.mxu0 %v18
  %57 = vmatprep.subr.mxu0 %v23
  %58 = vmatpush1.msra.mxu0 %v22
  %59 = vmatprep.subr.mxu0 %v27
  %60 = vmatpush1.msra.mxu0 %v26
  %61 = vmatprep.subr.mxu0 %v31
  %62 = vmatpush1.msra.mxu0 %v30
  %63 = vmatprep.subr.mxu0 %v47
  %64 = vmatpush1.msra.mxu0 %v44
  %65 = vmatprep.subr.mxu0 0.0
  %66 = vmatpush1.msra.mxu0 0.0
  %67 = vmatprep.subr.mxu0 0.0
  %68 = vmatpush1.msra.mxu0 0.0
  %69 = vmatprep.subr.mxu0 0.0
  %70 = vmatpush1.msra.mxu0 0.0
  %71 = vmatprep.subr.mxu0 0.0
  %72 = vmatpush1.msra.mxu0 0.0
  %73 = vmatprep.subr.mxu0 0.0
  %74 = vmatpush1.msra.mxu0 0.0
  %75 = vmatprep.subr.mxu0 0.0
  %76 = vmatpush1.msra.mxu0 0.0
  %77 = vmatprep.subr.mxu0 0.0
  %78 = vmatpush1.msra.mxu0 0.0
  %79 = vmatprep.subr.mxu0 0.0
  %80 = vmatpush1.msra.mxu0 0.0
  %81 = vmatprep.subr.mxu0 0.0
  %82 = vmatpush1.msra.mxu0 0.0
  %83 = vmatprep.subr.mxu0 0.0
  %84 = vmatpush1.msra.mxu0 0.0
  %85 = vmatprep.subr.mxu0 0.0
  %86 = vmatpush1.msra.mxu0 0.0
  %87 = vmatprep.subr.mxu0 0.0
  %88 = vmatpush1.msra.mxu0 0.0
  %89 = vmatprep.subr.mxu0 0.0
  %90 = vmatpush1.msra.mxu0 0.0
  %91 = vmatprep.subr.mxu0 0.0
  %92 = vmatpush1.msra.mxu0 0.0
  %93 = vmatprep.subr.mxu0 0.0
  %94 = vmatpush1.msra.mxu0 0.0
  %95 = vmatprep.subr.mxu0 0.0
  %96 = vmatpush1.msra.mxu0 0.0
  %97 = vmatprep.subr.mxu0 0.0
  %98 = vmatpush1.msra.mxu0 0.0
  %99 = vmatprep.subr.mxu0 0.0
  %100 = vmatpush1.msra.mxu0 0.0
  %101 = vmatprep.subr.mxu0 0.0
  %102 = vmatpush1.msra.mxu0 0.0
  %103 = vmatprep.subr.mxu0 0.0
  %104 = vmatpush1.msra.mxu0 0.0
  %105 = vmatprep.subr.mxu0 0.0
  %106 = vmatpush1.msra.mxu0 0.0
  %107 = vmatprep.subr.mxu0 0.0
  %108 = vmatpush1.msra.mxu0 0.0
  %109 = vmatprep.subr.mxu0 0.0
  %110 = vmatpush1.msra.mxu0 0.0
  %111 = vmatprep.subr.mxu0 0.0
  %112 = vmatpush1.msra.mxu0 0.0
  %113 = vmatprep.subr.mxu0 0.0
  %114 = vmatpush1.msra.mxu0 0.0
  %115 = vmatprep.subr.mxu0 0.0
  %116 = vmatpush1.msra.mxu0 0.0
  %117 = vmatprep.subr.mxu0 0.0
  %118 = vmatpush1.msra.mxu0 0.0
  %119 = vmatprep.mubr.f32.mxu0 0.0
  %120 = vmatmul.mubr.f32.gmra.mrb[0].mxu0 %v40
  %v121 = vpop.f32.mrb[0].mxu0
  %v122 = vadd.f32 0.0, %v121
  %v123 = vpop.f32.mrb[0].mxu0
  %v124 = vadd.f32 0.0, %v123
  %125 = vdwg.mxu0
  %126 = vmatprep.subr.mxu0 %v21
  %127 = vmatpush1.msra.mxu0 %v20
  %128 = vmatprep.subr.mxu0 %v25
  %129 = vmatpush1.msra.mxu0 %v24
  %130 = vmatprep.subr.mxu0 %v29
  %131 = vmatpush1.msra.mxu0 %v28
  %132 = vmatprep.subr.mxu0 %v33
  %133 = vmatpush1.msra.mxu0 %v32
  %134 = vmatprep.subr.mxu0 %v53
  %135 = vmatpush1.msra.mxu0 %v50
  %136 = vmatprep.subr.mxu0 0.0
  %137 = vmatpush1.msra.mxu0 0.0
  %138 = vmatprep.subr.mxu0 0.0
  %139 = vmatpush1.msra.mxu0 0.0
  %140 = vmatprep.subr.mxu0 0.0
  %141 = vmatpush1.msra.mxu0 0.0
  %142 = vmatprep.subr.mxu0 0.0
  %143 = vmatpush1.msra.mxu0 0.0
  %144 = vmatprep.subr.mxu0 0.0
  %145 = vmatpush1.msra.mxu0 0.0
  %146 = vmatprep.subr.mxu0 0.0
  %147 = vmatpush1.msra.mxu0 0.0
  %148 = vmatprep.subr.mxu0 0.0
  %149 = vmatpush1.msra.mxu0 0.0
  %150 = vmatprep.subr.mxu0 0.0
  %151 = vmatpush1.msra.mxu0 0.0
  %152 = vmatprep.subr.mxu0 0.0
  %153 = vmatpush1.msra.mxu0 0.0
  %154 = vmatprep.subr.mxu0 0.0
  %155 = vmatpush1.msra.mxu0 0.0
  %156 = vmatprep.subr.mxu0 0.0
  %157 = vmatpush1.msra.mxu0 0.0
  %158 = vmatprep.subr.mxu0 0.0
  %159 = vmatpush1.msra.mxu0 0.0
  %160 = vmatprep.subr.mxu0 0.0
  %161 = vmatpush1.msra.mxu0 0.0
  %162 = vmatprep.subr.mxu0 0.0
  %163 = vmatpush1.msra.mxu0 0.0
  %164 = vmatprep.subr.mxu0 0.0
  %165 = vmatpush1.msra.mxu0 0.0
  %166 = vmatprep.subr.mxu0 0.0
  %167 = vmatpush1.msra.mxu0 0.0
  %168 = vmatprep.subr.mxu0 0.0
  %169 = vmatpush1.msra.mxu0 0.0
  %170 = vmatprep.subr.mxu0 0.0
  %171 = vmatpush1.msra.mxu0 0.0
  %172 = vmatprep.subr.mxu0 0.0
  %173 = vmatpush1.msra.mxu0 0.0
  %174 = vmatprep.subr.mxu0 0.0
  %175 = vmatpush1.msra.mxu0 0.0
  %176 = vmatprep.subr.mxu0 0.0
  %177 = vmatpush1.msra.mxu0 0.0
  %178 = vmatprep.subr.mxu0 0.0
  %179 = vmatpush1.msra.mxu0 0.0
  %180 = vmatprep.subr.mxu0 0.0
  %181 = vmatpush1.msra.mxu0 0.0
  %182 = vmatprep.subr.mxu0 0.0
  %183 = vmatpush1.msra.mxu0 0.0
  %184 = vmatprep.subr.mxu0 0.0
  %185 = vmatpush1.msra.mxu0 0.0
  %186 = vmatprep.subr.mxu0 0.0
  %187 = vmatpush1.msra.mxu0 0.0
  %188 = vmatprep.subr.mxu0 0.0
  %189 = vmatpush1.msra.mxu0 0.0
  %190 = vmatprep.mubr.f32.mxu0 0.0
  %191 = vmatmul.mubr.f32.gmra.mrb[0].mxu0 %v40
  %v192 = vpop.f32.mrb[0].mxu0
  %v193 = vadd.f32 0.0, %v192
  %v194 = vpop.f32.mrb[0].mxu0
  %v195 = vadd.f32 0.0, %v194
  %196 = vdwg.mxu0
  %s197 = smul.u32 0, 512
  %s198 = sshra.s32 %s197, 7
  %s199 = sand.u32 %s197, 127
  %s200 = smul.addr %s198, 8
  %s201 = scalar_lea.vmem %s4, %s200
  %202 = vst [vmem:[%s201] sm:$0xff] %v122
  %203 = vst [vmem:[%s201 + $0x8] sm:$0xff] %v124
  %204 = vst [vmem:[%s201 + $0x10] sm:$0xff] %v193
  %205 = vst [vmem:[%s201 + $0x18] sm:$0xff] %v195
  %p206 = scmp.eq.s32.totalorder 0, 0
  // Predicated region
  $region18: #{_lambda_.3} parent=0 // pred_check
    %p207 = pneg %p206
  $region19: #{_lambda_.3} parent=0 // pred_check_branch
    %209 = sbr.rel (%p207) target = $region21
  $region20: #{_lambda_.3} parent=0 // pred_region
    %v210 = vld [vmem:[%s4] sm:$0xff]
    %v211 = vld [vmem:[%s4 + $0x8] sm:$0xff]
    %v212 = vld [vmem:[%s4 + $0x10] sm:$0xff]
    %v213 = vld [vmem:[%s4 + $0x18] sm:$0xff]
    %v214 = vadd.f32 %v210, %v211
    %v215 = vadd.f32 %v214, %v212
    %v216 = vadd.f32 %v215, %v213
    %217 = vadd.xlane.f32.xlu0 %v216
    %v218 = vpop.xlane.xlu0 %217
    %v219 = vmul.f32 %v218, 0.001953125
    %v220 = vsub.f32 %v210, %v219
    %v221 = vsub.f32 %v211, %v219
    %v222 = vsub.f32 %v212, %v219
    %v223 = vsub.f32 %v213, %v219
    %v224 = vmul.f32 %v220, %v220
    %v225 = vmul.f32 %v221, %v221
    %v226 = vmul.f32 %v222, %v222
    %v227 = vmul.f32 %v223, %v223
    %v228 = vadd.f32 %v224, %v225
    %v229 = vadd.f32 %v228, %v226
    %v230 = vadd.f32 %v229, %v227
    %231 = vadd.xlane.f32.xlu0 %v230
    %v232 = vpop.xlane.xlu0 %231
    %v233 = vmul.f32 %v232, 0.001953125
    %v234 = vld [vmem:[%s2] sm:$0xff]
    %v235 = vadd.f32 %v233, 1e-05
    %v236 = vrsqrt.pop %v235
    %v237 = vmul.f32 %v234, %v236
    %v238 = vld [vmem:[%s3] sm:$0xff]
    %v239 = vmul.f32 %v219, %v237
    %v240 = vsub.f32 %v238, %v239
    %242 = vset.pattern.permute.xlu0 0
    %243 = vperm.xlu0 %242, %v237
    %v244 = vpop.permute.xlu0 %243
    %v246 = vmul.f32 %v210, %v244
    %v247 = vmul.f32 %v211, %v244
    %v248 = vmul.f32 %v212, %v244
    %v249 = vmul.f32 %v213, %v244
    %251 = vset.pattern.permute.xlu0 0
    %252 = vperm.xlu0 %251, %v240
    %v253 = vpop.permute.xlu0 %252
    %v255 = vadd.f32 %v246, %v253
    %v256 = vadd.f32 %v247, %v253
    %v257 = vadd.f32 %v248, %v253
    %v258 = vadd.f32 %v249, %v253
    %vm259 = vcmp.ge.f32.partialorder %v255, 0.0
    %vm260 = vcmp.ge.f32.partialorder %v256, 0.0
    %vm261 = vcmp.ge.f32.partialorder %v257, 0.0
    %vm262 = vcmp.ge.f32.partialorder %v258, 0.0
    %v263 = vmul.f32 %v255, 0.01
    %v264 = vmul.f32 %v256, 0.01
    %v265 = vmul.f32 %v257, 0.01
    %v266 = vmul.f32 %v258, 0.01
    %v267 = vsel %vm259, %v255, %v263
    %v268 = vsel %vm260, %v256, %v264
    %v269 = vsel %vm261, %v257, %v265
    %v270 = vsel %vm262, %v258, %v266
    %271 = vst [vmem:[%s4] sm:$0xff] %v267
    %272 = vst [vmem:[%s4 + $0x8] sm:$0xff] %v268
    %273 = vst [vmem:[%s4 + $0x10] sm:$0xff] %v269
    %274 = vst [vmem:[%s4 + $0x18] sm:$0xff] %v270
  $region21: #{_lambda_.3} parent=0 // pred_fallthru
    _
  // Predicated region
  $region22: #{_lambda_.3} parent=0 // pred_check
    _
  $region23: #{_lambda_.3} parent=0 // pred_check_branch
    %276 = sbr.rel (0) target = $region25
  $region24: #{_lambda_.3} parent=0 // pred_region
    _
  $region25: #{_lambda_.3} parent=0 // pred_fallthru
    _
  // Predicated region
  $region26: #{_lambda_.3} parent=0 // pred_check
    _
  $region27: #{_lambda_.3} parent=0 // pred_check_branch
    %278 = sbr.rel (0) target = $region29
  $region28: #{_lambda_.3} parent=0 // pred_region
    _
  $region29: #{_lambda_.3} parent=0 // pred_fallthru
    _

// kernel: _lambda_.4
$region0: #{_lambda_.4}
  #allocation0 [shape = 'u32[]', space=smem, size = 0x4, offset = 0x4, fixed_abs, tag = 'smem constant byte address 0x4 - core index']
  #allocation1 [shape = 'u32[144,128]{1,0:T(1,128)}', space=vmem, size = 0x12000, scoped, tag = 'internal scratch']
  %s0 = inlined_call_operand.vmem [shape: f32[72,512], index: 0, kind: input, shape index: {}]
  %s1 = inlined_call_operand.vmem [shape: f32[8,72], index: 1, kind: input, shape index: {}]
  %s2 = inlined_call_operand.vmem [shape: f32[8,1], index: 2, kind: input, shape index: {}]
  %s3 = inlined_call_operand.vmem [shape: f32[8,1], index: 3, kind: input, shape index: {}]
  %s4 = inlined_call_operand.vmem [shape: f32[8,512], index: 4, kind: output, shape index: {}]
  %s5 = sld [smem:[#allocation0]]
  $region30: #{_lambda_.4} parent=0
    _
  %s7 = ssub.s32 1, %s5
  %s8 = scalar_select 0, %s7, %s5
  // Predicated region
  $region2: #{_lambda_.4} parent=0 // pred_check
    _
  $region3: #{_lambda_.4} parent=0 // pred_check_branch
    %10 = sbr.rel (0) target = $region5
  $region4: #{_lambda_.4} parent=0 // pred_region
    _
  $region5: #{_lambda_.4} parent=0 // pred_fallthru
    _
  // Predicated region
  $region6: #{_lambda_.4} parent=0 // pred_check
    _
  $region7: #{_lambda_.4} parent=0 // pred_check_branch
    %12 = sbr.rel (0) target = $region9
  $region8: #{_lambda_.4} parent=0 // pred_region
    _
  $region9: #{_lambda_.4} parent=0 // pred_fallthru
    _
  // Predicated region
  $region10: #{_lambda_.4} parent=0 // pred_check
    _
  $region11: #{_lambda_.4} parent=0 // pred_check_branch
    %14 = sbr.rel (0) target = $region13
  $region12: #{_lambda_.4} parent=0 // pred_region
    _
  $region13: #{_lambda_.4} parent=0 // pred_fallthru
    _
  // Predicated region
  $region14: #{_lambda_.4} parent=0 // pred_check
    _
  $region15: #{_lambda_.4} parent=0 // pred_check_branch
    %16 = sbr.rel (0) target = $region17
  $region16: #{_lambda_.4} parent=0 // pred_region
    _
  $region17: #{_lambda_.4} parent=0 // pred_fallthru
    _
  %v17 = vld [vmem:[%s1] sm:$0xff]
  %v18 = vld [vmem:[%s0] sm:$0xff]
  %v19 = vld [vmem:[%s0 + $0x8] sm:$0xff]
  %v20 = vld [vmem:[%s0 + $0x10] sm:$0xff]
  %v21 = vld [vmem:[%s0 + $0x18] sm:$0xff]
  %v22 = vld [vmem:[%s0 + $0x20] sm:$0xff]
  %v23 = vld [vmem:[%s0 + $0x28] sm:$0xff]
  %v24 = vld [vmem:[%s0 + $0x30] sm:$0xff]
  %v25 = vld [vmem:[%s0 + $0x38] sm:$0xff]
  %v26 = vld [vmem:[%s0 + $0x40] sm:$0xff]
  %v27 = vld [vmem:[%s0 + $0x48] sm:$0xff]
  %v28 = vld [vmem:[%s0 + $0x50] sm:$0xff]
  %v29 = vld [vmem:[%s0 + $0x58] sm:$0xff]
  %v30 = vld [vmem:[%s0 + $0x60] sm:$0xff]
  %v31 = vld [vmem:[%s0 + $0x68] sm:$0xff]
  %v32 = vld [vmem:[%s0 + $0x70] sm:$0xff]
  %v33 = vld [vmem:[%s0 + $0x78] sm:$0xff]
  %v34 = vld [vmem:[%s0 + $0x80] sm:$0xff]
  %v35 = vld [vmem:[%s0 + $0x88] sm:$0xff]
  %v36 = vld [vmem:[%s0 + $0x90] sm:$0xff]
  %v37 = vld [vmem:[%s0 + $0x98] sm:$0xff]
  %v38 = vld [vmem:[%s0 + $0xa0] sm:$0xff]
  %v39 = vld [vmem:[%s0 + $0xa8] sm:$0xff]
  %v40 = vld [vmem:[%s0 + $0xb0] sm:$0xff]
  %v41 = vld [vmem:[%s0 + $0xb8] sm:$0xff]
  %v42 = vld [vmem:[%s0 + $0xc0] sm:$0xff]
  %v43 = vld [vmem:[%s0 + $0xc8] sm:$0xff]
  %v44 = vld [vmem:[%s0 + $0xd0] sm:$0xff]
  %v45 = vld [vmem:[%s0 + $0xd8] sm:$0xff]
  %v46 = vld [vmem:[%s0 + $0xe0] sm:$0xff]
  %v47 = vld [vmem:[%s0 + $0xe8] sm:$0xff]
  %v48 = vld [vmem:[%s0 + $0xf0] sm:$0xff]
  %v49 = vld [vmem:[%s0 + $0xf8] sm:$0xff]
  %v50 = vld [vmem:[%s0 + $0x100] sm:$0xff]
  %v51 = vld [vmem:[%s0 + $0x108] sm:$0xff]
  %v52 = vld [vmem:[%s0 + $0x110] sm:$0xff]
  %v53 = vld [vmem:[%s0 + $0x118] sm:$0xff]
  %vm54 = vcmask 588800
  %v56 = vsel %vm54, %v17, 0
  %58 = vmatprep.subr.mxu0 %v19
  %59 = vmatpush1.msra.mxu0 %v18
  %60 = vmatprep.subr.mxu0 %v23
  %61 = vmatpush1.msra.mxu0 %v22
  %62 = vmatprep.subr.mxu0 %v27
  %63 = vmatpush1.msra.mxu0 %v26
  %64 = vmatprep.subr.mxu0 %v31
  %65 = vmatpush1.msra.mxu0 %v30
  %66 = vmatprep.subr.mxu0 %v35
  %67 = vmatpush1.msra.mxu0 %v34
  %68 = vmatprep.subr.mxu0 %v39
  %69 = vmatpush1.msra.mxu0 %v38
  %70 = vmatprep.subr.mxu0 %v43
  %71 = vmatpush1.msra.mxu0 %v42
  %72 = vmatprep.subr.mxu0 %v47
  %73 = vmatpush1.msra.mxu0 %v46
  %74 = vmatprep.subr.mxu0 %v51
  %75 = vmatpush1.msra.mxu0 %v50
  %76 = vmatprep.subr.mxu0 0.0
  %77 = vmatpush1.msra.mxu0 0.0
  %78 = vmatprep.subr.mxu0 0.0
  %79 = vmatpush1.msra.mxu0 0.0
  %80 = vmatprep.subr.mxu0 0.0
  %81 = vmatpush1.msra.mxu0 0.0
  %82 = vmatprep.subr.mxu0 0.0
  %83 = vmatpush1.msra.mxu0 0.0
  %84 = vmatprep.subr.mxu0 0.0
  %85 = vmatpush1.msra.mxu0 0.0
  %86 = vmatprep.subr.mxu0 0.0
  %87 = vmatpush1.msra.mxu0 0.0
  %88 = vmatprep.subr.mxu0 0.0
  %89 = vmatpush1.msra.mxu0 0.0
  %90 = vmatprep.subr.mxu0 0.0
  %91 = vmatpush1.msra.mxu0 0.0
  %92 = vmatprep.subr.mxu0 0.0
  %93 = vmatpush1.msra.mxu0 0.0
  %94 = vmatprep.subr.mxu0 0.0
  %95 = vmatpush1.msra.mxu0 0.0
  %96 = vmatprep.subr.mxu0 0.0
  %97 = vmatpush1.msra.mxu0 0.0
  %98 = vmatprep.subr.mxu0 0.0
  %99 = vmatpush1.msra.mxu0 0.0
  %100 = vmatprep.subr.mxu0 0.0
  %101 = vmatpush1.msra.mxu0 0.0
  %102 = vmatprep.subr.mxu0 0.0
  %103 = vmatpush1.msra.mxu0 0.0
  %104 = vmatprep.subr.mxu0 0.0
  %105 = vmatpush1.msra.mxu0 0.0
  %106 = vmatprep.subr.mxu0 0.0
  %107 = vmatpush1.msra.mxu0 0.0
  %108 = vmatprep.subr.mxu0 0.0
  %109 = vmatpush1.msra.mxu0 0.0
  %110 = vmatprep.subr.mxu0 0.0
  %111 = vmatpush1.msra.mxu0 0.0
  %112 = vmatprep.subr.mxu0 0.0
  %113 = vmatpush1.msra.mxu0 0.0
  %114 = vmatprep.subr.mxu0 0.0
  %115 = vmatpush1.msra.mxu0 0.0
  %116 = vmatprep.subr.mxu0 0.0
  %117 = vmatpush1.msra.mxu0 0.0
  %118 = vmatprep.subr.mxu0 0.0
  %119 = vmatpush1.msra.mxu0 0.0
  %120 = vmatprep.subr.mxu0 0.0
  %121 = vmatpush1.msra.mxu0 0.0
  %122 = vmatprep.mubr.f32.mxu0 0.0
  %123 = vmatmul.mubr.f32.gmra.mrb[0].mxu0 %v56
  %v124 = vpop.f32.mrb[0].mxu0
  %v125 = vadd.f32 0.0, %v124
  %v126 = vpop.f32.mrb[0].mxu0
  %v127 = vadd.f32 0.0, %v126
  %128 = vdwg.mxu0
  %129 = vmatprep.subr.mxu0 %v21
  %130 = vmatpush1.msra.mxu0 %v20
  %131 = vmatprep.subr.mxu0 %v25
  %132 = vmatpush1.msra.mxu0 %v24
  %133 = vmatprep.subr.mxu0 %v29
  %134 = vmatpush1.msra.mxu0 %v28
  %135 = vmatprep.subr.mxu0 %v33
  %136 = vmatpush1.msra.mxu0 %v32
  %137 = vmatprep.subr.mxu0 %v37
  %138 = vmatpush1.msra.mxu0 %v36
  %139 = vmatprep.subr.mxu0 %v41
  %140 = vmatpush1.msra.mxu0 %v40
  %141 = vmatprep.subr.mxu0 %v45
  %142 = vmatpush1.msra.mxu0 %v44
  %143 = vmatprep.subr.mxu0 %v49
  %144 = vmatpush1.msra.mxu0 %v48
  %145 = vmatprep.subr.mxu0 %v53
  %146 = vmatpush1.msra.mxu0 %v52
  %147 = vmatprep.subr.mxu0 0.0
  %148 = vmatpush1.msra.mxu0 0.0
  %149 = vmatprep.subr.mxu0 0.0
  %150 = vmatpush1.msra.mxu0 0.0
  %151 = vmatprep.subr.mxu0 0.0
  %152 = vmatpush1.msra.mxu0 0.0
  %153 = vmatprep.subr.mxu0 0.0
  %154 = vmatpush1.msra.mxu0 0.0
  %155 = vmatprep.subr.mxu0 0.0
  %156 = vmatpush1.msra.mxu0 0.0
  %157 = vmatprep.subr.mxu0 0.0
  %158 = vmatpush1.msra.mxu0 0.0
  %159 = vmatprep.subr.mxu0 0.0
  %160 = vmatpush1.msra.mxu0 0.0
  %161 = vmatprep.subr.mxu0 0.0
  %162 = vmatpush1.msra.mxu0 0.0
  %163 = vmatprep.subr.mxu0 0.0
  %164 = vmatpush1.msra.mxu0 0.0
  %165 = vmatprep.subr.mxu0 0.0
  %166 = vmatpush1.msra.mxu0 0.0
  %167 = vmatprep.subr.mxu0 0.0
  %168 = vmatpush1.msra.mxu0 0.0
  %169 = vmatprep.subr.mxu0 0.0
  %170 = vmatpush1.msra.mxu0 0.0
  %171 = vmatprep.subr.mxu0 0.0
  %172 = vmatpush1.msra.mxu0 0.0
  %173 = vmatprep.subr.mxu0 0.0
  %174 = vmatpush1.msra.mxu0 0.0
  %175 = vmatprep.subr.mxu0 0.0
  %176 = vmatpush1.msra.mxu0 0.0
  %177 = vmatprep.subr.mxu0 0.0
  %178 = vmatpush1.msra.mxu0 0.0
  %179 = vmatprep.subr.mxu0 0.0
  %180 = vmatpush1.msra.mxu0 0.0
  %181 = vmatprep.subr.mxu0 0.0
  %182 = vmatpush1.msra.mxu0 0.0
  %183 = vmatprep.subr.mxu0 0.0
  %184 = vmatpush1.msra.mxu0 0.0
  %185 = vmatprep.subr.mxu0 0.0
  %186 = vmatpush1.msra.mxu0 0.0
  %187 = vmatprep.subr.mxu0 0.0
  %188 = vmatpush1.msra.mxu0 0.0
  %189 = vmatprep.subr.mxu0 0.0
  %190 = vmatpush1.msra.mxu0 0.0
  %191 = vmatprep.subr.mxu0 0.0
  %192 = vmatpush1.msra.mxu0 0.0
  %193 = vmatprep.mubr.f32.mxu0 0.0
  %194 = vmatmul.mubr.f32.gmra.mrb[0].mxu0 %v56
  %v195 = vpop.f32.mrb[0].mxu0
  %v196 = vadd.f32 0.0, %v195
  %v197 = vpop.f32.mrb[0].mxu0
  %v198 = vadd.f32 0.0, %v197
  %199 = vdwg.mxu0
  %s200 = smul.u32 0, 512
  %s201 = sshra.s32 %s200, 7
  %s202 = sand.u32 %s200, 127
  %s203 = smul.addr %s201, 8
  %s204 = scalar_lea.vmem %s4, %s203
  %205 = vst [vmem:[%s204] sm:$0xff] %v125
  %206 = vst [vmem:[%s204 + $0x8] sm:$0xff] %v127
  %207 = vst [vmem:[%s204 + $0x10] sm:$0xff] %v196
  %208 = vst [vmem:[%s204 + $0x18] sm:$0xff] %v198
  %p209 = scmp.eq.s32.totalorder 0, 0
  // Predicated region
  $region18: #{_lambda_.4} parent=0 // pred_check
    %p210 = pneg %p209
  $region19: #{_lambda_.4} parent=0 // pred_check_branch
    %212 = sbr.rel (%p210) target = $region21
  $region20: #{_lambda_.4} parent=0 // pred_region
    %v213 = vld [vmem:[%s4] sm:$0xff]
    %v214 = vld [vmem:[%s4 + $0x8] sm:$0xff]
    %v215 = vld [vmem:[%s4 + $0x10] sm:$0xff]
    %v216 = vld [vmem:[%s4 + $0x18] sm:$0xff]
    %v217 = vadd.f32 %v213, %v214
    %v218 = vadd.f32 %v217, %v215
    %v219 = vadd.f32 %v218, %v216
    %220 = vadd.xlane.f32.xlu0 %v219
    %v221 = vpop.xlane.xlu0 %220
    %v222 = vmul.f32 %v221, 0.001953125
    %v223 = vsub.f32 %v213, %v222
    %v224 = vsub.f32 %v214, %v222
    %v225 = vsub.f32 %v215, %v222
    %v226 = vsub.f32 %v216, %v222
    %v227 = vmul.f32 %v223, %v223
    %v228 = vmul.f32 %v224, %v224
    %v229 = vmul.f32 %v225, %v225
    %v230 = vmul.f32 %v226, %v226
    %v231 = vadd.f32 %v227, %v228
    %v232 = vadd.f32 %v231, %v229
    %v233 = vadd.f32 %v232, %v230
    %234 = vadd.xlane.f32.xlu0 %v233
    %v235 = vpop.xlane.xlu0 %234
    %v236 = vmul.f32 %v235, 0.001953125
    %v237 = vld [vmem:[%s2] sm:$0xff]
    %v238 = vadd.f32 %v236, 1e-05
    %v239 = vrsqrt.pop %v238
    %v240 = vmul.f32 %v237, %v239
    %v241 = vld [vmem:[%s3] sm:$0xff]
    %v242 = vmul.f32 %v222, %v240
    %v243 = vsub.f32 %v241, %v242
    %245 = vset.pattern.permute.xlu0 0
    %246 = vperm.xlu0 %245, %v240
    %v247 = vpop.permute.xlu0 %246
    %v249 = vmul.f32 %v213, %v247
    %v250 = vmul.f32 %v214, %v247
    %v251 = vmul.f32 %v215, %v247
    %v252 = vmul.f32 %v216, %v247
    %254 = vset.pattern.permute.xlu0 0
    %255 = vperm.xlu0 %254, %v243
    %v256 = vpop.permute.xlu0 %255
    %v258 = vadd.f32 %v249, %v256
    %v259 = vadd.f32 %v250, %v256
    %v260 = vadd.f32 %v251, %v256
    %v261 = vadd.f32 %v252, %v256
    %vm262 = vcmp.ge.f32.partialorder %v258, 0.0
    %vm263 = vcmp.ge.f32.partialorder %v259, 0.0
    %vm264 = vcmp.ge.f32.partialorder %v260, 0.0
    %vm265 = vcmp.ge.f32.partialorder %v261, 0.0
    %v266 = vmul.f32 %v258, 0.01
    %v267 = vmul.f32 %v259, 0.01
    %v268 = vmul.f32 %v260, 0.01
    %v269 = vmul.f32 %v261, 0.01
    %v270 = vsel %vm262, %v258, %v266
    %v271 = vsel %vm263, %v259, %v267
    %v272 = vsel %vm264, %v260, %v268
    %v273 = vsel %vm265, %v261, %v269
    %274 = vst [vmem:[%s4] sm:$0xff] %v270
    %275 = vst [vmem:[%s4 + $0x8] sm:$0xff] %v271
    %276 = vst [vmem:[%s4 + $0x10] sm:$0xff] %v272
    %277 = vst [vmem:[%s4 + $0x18] sm:$0xff] %v273
  $region21: #{_lambda_.4} parent=0 // pred_fallthru
    _
  // Predicated region
  $region22: #{_lambda_.4} parent=0 // pred_check
    _
  $region23: #{_lambda_.4} parent=0 // pred_check_branch
    %279 = sbr.rel (0) target = $region25
  $region24: #{_lambda_.4} parent=0 // pred_region
    _
  $region25: #{_lambda_.4} parent=0 // pred_fallthru
    _
  // Predicated region
  $region26: #{_lambda_.4} parent=0 // pred_check
    _
  $region27: #{_lambda_.4} parent=0 // pred_check_branch
    %281 = sbr.rel (0) target = $region29
  $region28: #{_lambda_.4} parent=0 // pred_region
    _
  $region29: #{_lambda_.4} parent=0 // pred_fallthru
    _

// kernel: _lambda_.5
$region0: #{_lambda_.5}
  #allocation0 [shape = 'u32[]', space=smem, size = 0x4, offset = 0x4, fixed_abs, tag = 'smem constant byte address 0x4 - core index']
  #allocation1 [shape = 'u32[144,128]{1,0:T(1,128)}', space=vmem, size = 0x12000, scoped, tag = 'internal scratch']
  %s0 = inlined_call_operand.vmem [shape: f32[72,128], index: 0, kind: input, shape index: {}]
  %s1 = inlined_call_operand.vmem [shape: f32[8,72], index: 1, kind: input, shape index: {}]
  %s2 = inlined_call_operand.vmem [shape: f32[8,1], index: 2, kind: input, shape index: {}]
  %s3 = inlined_call_operand.vmem [shape: f32[8,1], index: 3, kind: input, shape index: {}]
  %s4 = inlined_call_operand.vmem [shape: f32[8,128], index: 4, kind: output, shape index: {}]
  %s5 = sld [smem:[#allocation0]]
  $region30: #{_lambda_.5} parent=0
    _
  %s7 = ssub.s32 1, %s5
  %s8 = scalar_select 0, %s7, %s5
  // Predicated region
  $region2: #{_lambda_.5} parent=0 // pred_check
    _
  $region3: #{_lambda_.5} parent=0 // pred_check_branch
    %10 = sbr.rel (0) target = $region5
  $region4: #{_lambda_.5} parent=0 // pred_region
    _
  $region5: #{_lambda_.5} parent=0 // pred_fallthru
    _
  // Predicated region
  $region6: #{_lambda_.5} parent=0 // pred_check
    _
  $region7: #{_lambda_.5} parent=0 // pred_check_branch
    %12 = sbr.rel (0) target = $region9
  $region8: #{_lambda_.5} parent=0 // pred_region
    _
  $region9: #{_lambda_.5} parent=0 // pred_fallthru
    _
  // Predicated region
  $region10: #{_lambda_.5} parent=0 // pred_check
    _
  $region11: #{_lambda_.5} parent=0 // pred_check_branch
    %14 = sbr.rel (0) target = $region13
  $region12: #{_lambda_.5} parent=0 // pred_region
    _
  $region13: #{_lambda_.5} parent=0 // pred_fallthru
    _
  // Predicated region
  $region14: #{_lambda_.5} parent=0 // pred_check
    _
  $region15: #{_lambda_.5} parent=0 // pred_check_branch
    %16 = sbr.rel (0) target = $region17
  $region16: #{_lambda_.5} parent=0 // pred_region
    _
  $region17: #{_lambda_.5} parent=0 // pred_fallthru
    _
  %v17 = vld [vmem:[%s1] sm:$0xff]
  %v18 = vld [vmem:[%s0] sm:$0xff]
  %v19 = vld [vmem:[%s0 + $0x8] sm:$0xff]
  %v20 = vld [vmem:[%s0 + $0x10] sm:$0xff]
  %v21 = vld [vmem:[%s0 + $0x18] sm:$0xff]
  %v22 = vld [vmem:[%s0 + $0x20] sm:$0xff]
  %v23 = vld [vmem:[%s0 + $0x28] sm:$0xff]
  %v24 = vld [vmem:[%s0 + $0x30] sm:$0xff]
  %v25 = vld [vmem:[%s0 + $0x38] sm:$0xff]
  %v26 = vld [vmem:[%s0 + $0x40] sm:$0xff]
  %vm27 = vcmask 588800
  %v29 = vsel %vm27, %v17, 0
  %31 = vmatprep.subr.mxu0 0.0
  %32 = vmatpush1.msra.mxu0 %v18
  %33 = vmatprep.subr.mxu0 0.0
  %34 = vmatpush1.msra.mxu0 %v19
  %35 = vmatprep.subr.mxu0 0.0
  %36 = vmatpush1.msra.mxu0 %v20
  %37 = vmatprep.subr.mxu0 0.0
  %38 = vmatpush1.msra.mxu0 %v21
  %39 = vmatprep.subr.mxu0 0.0
  %40 = vmatpush1.msra.mxu0 %v22
  %41 = vmatprep.subr.mxu0 0.0
  %42 = vmatpush1.msra.mxu0 %v23
  %43 = vmatprep.subr.mxu0 0.0
  %44 = vmatpush1.msra.mxu0 %v24
  %45 = vmatprep.subr.mxu0 0.0
  %46 = vmatpush1.msra.mxu0 %v25
  %47 = vmatprep.subr.mxu0 0.0
  %48 = vmatpush1.msra.mxu0 %v26
  %49 = vmatprep.subr.mxu0 0.0
  %50 = vmatpush1.msra.mxu0 0.0
  %51 = vmatprep.subr.mxu0 0.0
  %52 = vmatpush1.msra.mxu0 0.0
  %53 = vmatprep.subr.mxu0 0.0
  %54 = vmatpush1.msra.mxu0 0.0
  %55 = vmatprep.subr.mxu0 0.0
  %56 = vmatpush1.msra.mxu0 0.0
  %57 = vmatprep.subr.mxu0 0.0
  %58 = vmatpush1.msra.mxu0 0.0
  %59 = vmatprep.subr.mxu0 0.0
  %60 = vmatpush1.msra.mxu0 0.0
  %61 = vmatprep.subr.mxu0 0.0
  %62 = vmatpush1.msra.mxu0 0.0
  %63 = vmatprep.subr.mxu0 0.0
  %64 = vmatpush1.msra.mxu0 0.0
  %65 = vmatprep.subr.mxu0 0.0
  %66 = vmatpush1.msra.mxu0 0.0
  %67 = vmatprep.subr.mxu0 0.0
  %68 = vmatpush1.msra.mxu0 0.0
  %69 = vmatprep.subr.mxu0 0.0
  %70 = vmatpush1.msra.mxu0 0.0
  %71 = vmatprep.subr.mxu0 0.0
  %72 = vmatpush1.msra.mxu0 0.0
  %73 = vmatprep.subr.mxu0 0.0
  %74 = vmatpush1.msra.mxu0 0.0
  %75 = vmatprep.subr.mxu0 0.0
  %76 = vmatpush1.msra.mxu0 0.0
  %77 = vmatprep.subr.mxu0 0.0
  %78 = vmatpush1.msra.mxu0 0.0
  %79 = vmatprep.subr.mxu0 0.0
  %80 = vmatpush1.msra.mxu0 0.0
  %81 = vmatprep.subr.mxu0 0.0
  %82 = vmatpush1.msra.mxu0 0.0
  %83 = vmatprep.subr.mxu0 0.0
  %84 = vmatpush1.msra.mxu0 0.0
  %85 = vmatprep.subr.mxu0 0.0
  %86 = vmatpush1.msra.mxu0 0.0
  %87 = vmatprep.subr.mxu0 0.0
  %88 = vmatpush1.msra.mxu0 0.0
  %89 = vmatprep.subr.mxu0 0.0
  %90 = vmatpush1.msra.mxu0 0.0
  %91 = vmatprep.subr.mxu0 0.0
  %92 = vmatpush1.msra.mxu0 0.0
  %93 = vmatprep.subr.mxu0 0.0
  %94 = vmatpush1.msra.mxu0 0.0
  %95 = vmatprep.mubr.f32.mxu0 0.0
  %96 = vmatmul.mubr.f32.gmra.mrb[0].mxu0 %v29
  %v97 = vpop.f32.mrb[0].mxu0
  %v98 = vadd.f32 0.0, %v97
  %v99 = vpop.f32.mrb[0].mxu0
  %100 = vdwg.mxu0
  %s101 = smul.u32 0, 128
  %s102 = sshra.s32 %s101, 7
  %s103 = sand.u32 %s101, 127
  %s104 = scalar_lea.vmem %s4, %s102
  %105 = vst [vmem:[%s104] sm:$0xff] %v98
  %p106 = scmp.eq.s32.totalorder 0, 0
  // Predicated region
  $region18: #{_lambda_.5} parent=0 // pred_check
    %p107 = pneg %p106
  $region19: #{_lambda_.5} parent=0 // pred_check_branch
    %109 = sbr.rel (%p107) target = $region21
  $region20: #{_lambda_.5} parent=0 // pred_region
    %v110 = vld [vmem:[%s4] sm:$0xff]
    %111 = vadd.xlane.f32.xlu0 %v110
    %v112 = vpop.xlane.xlu0 %111
    %v113 = vmul.f32 %v112, 0.0078125
    %v114 = vsub.f32 %v110, %v113
    %v115 = vmul.f32 %v114, %v114
    %116 = vadd.xlane.f32.xlu0 %v115
    %v117 = vpop.xlane.xlu0 %116
    %v118 = vmul.f32 %v117, 0.0078125
    %v119 = vld [vmem:[%s2] sm:$0xff]
    %v120 = vadd.f32 %v118, 1e-05
    %v121 = vrsqrt.pop %v120
    %v122 = vmul.f32 %v119, %v121
    %v123 = vld [vmem:[%s3] sm:$0xff]
    %v124 = vmul.f32 %v113, %v122
    %v125 = vsub.f32 %v123, %v124
    %127 = vset.pattern.permute.xlu0 0
    %128 = vperm.xlu0 %127, %v122
    %v129 = vpop.permute.xlu0 %128
    %v131 = vmul.f32 %v110, %v129
    %133 = vset.pattern.permute.xlu0 0
    %134 = vperm.xlu0 %133, %v125
    %v135 = vpop.permute.xlu0 %134
    %v137 = vadd.f32 %v131, %v135
    %vm138 = vcmp.ge.f32.partialorder %v137, 0.0
    %v139 = vmul.f32 %v137, 0.01
    %v140 = vsel %vm138, %v137, %v139
    %141 = vst [vmem:[%s4] sm:$0xff] %v140
  $region21: #{_lambda_.5} parent=0 // pred_fallthru
    _
  // Predicated region
  $region22: #{_lambda_.5} parent=0 // pred_check
    _
  $region23: #{_lambda_.5} parent=0 // pred_check_branch
    %143 = sbr.rel (0) target = $region25
  $region24: #{_lambda_.5} parent=0 // pred_region
    _
  $region25: #{_lambda_.5} parent=0 // pred_fallthru
    _
  // Predicated region
  $region26: #{_lambda_.5} parent=0 // pred_check
    _
  $region27: #{_lambda_.5} parent=0 // pred_check_branch
    %145 = sbr.rel (0) target = $region29
  $region28: #{_lambda_.5} parent=0 // pred_region
    _
  $region29: #{_lambda_.5} parent=0 // pred_fallthru
    _

</llo_original>
